<compile_context>
chip_gen: v6e
topology: v6e:2x2x1
jax: 0.10.0
libtpu: 0.0.40
codegen_flags: <defaults>
</compile_context>

<pallas_src>
import functools

import jax
import jax.numpy as jnp
from jax.experimental import pallas as pl
from jax.experimental.pallas import tpu as pltpu

_LANE = 128   # TPU lane width (last dim)
_SUBLANE = 8  # f32 sublane width (second-to-last dim)


def _round_up(n, m):
    return ((n + m - 1) // m) * m


def _pad_width(n, compute_dtype):
    # bf16 MXU tiles on v6e/v7x are 2x256^2: round to 256 when the logical dim
    # is already >=128; otherwise keep 128 so padding waste stays small (and
    # v5e's 4x128^2 MXU is fully used either way).
    if jnp.dtype(compute_dtype) == jnp.dtype(jnp.bfloat16) and n >= _LANE:
        return _round_up(n, 2 * _LANE)
    return _round_up(max(n, _LANE), _LANE)


def lrnet_kernel(x_ref, w1_ref, b1_ref, w2_ref, b2_ref, out_ref):
    cd = w1_ref.dtype                       # compute dtype (weights pre-cast in wrapper)
    x = x_ref[...].astype(cd)               # x streams, so the per-step cast is unavoidable
    # Hidden layer: (tb, F) @ (F, Hpad) on the MXU, f32 accumulation.
    h = jnp.dot(x, w1_ref[...], preferred_element_type=jnp.float32)
    # Bias + ReLU epilogue in f32 on the VPU.
    h = jnp.maximum(h + b1_ref[...], 0.0)
    # Output layer: (tb, Hpad) @ (Hpad, Opad) -> lane-dense (tb, Opad).
    y = jnp.dot(h.astype(cd), w2_ref[...], preferred_element_type=jnp.float32)
    out_ref[...] = (y + b2_ref[...]).astype(out_ref.dtype)


def prepare_params(w1, b1, w2, b2, compute_dtype=jnp.float32):
    """One-time parameter prep (hoisted out of the per-call forward).

    Zero-pads H/O to lane-dense widths and pre-casts the weights to
    compute_dtype. Biases stay f32 (added to the f32 accumulator).
      w1: (F, H), b1: (1, H) or (H,), w2: (H, O), b2: (1, O) or (O,)
    """
    F, H = w1.shape
    O = w2.shape[1]
    Hpad = _pad_width(H, compute_dtype)
    Opad = _pad_width(O, compute_dtype)
    w1p = jnp.zeros((F, Hpad), compute_dtype).at[:, :H].set(w1.astype(compute_dtype))
    w2p = jnp.zeros((Hpad, Opad), compute_dtype).at[:H, :O].set(w2.astype(compute_dtype))
    b1p = jnp.zeros((1, Hpad), jnp.float32).at[:, :H].set(
        b1.reshape(1, H).astype(jnp.float32))
    b2p = jnp.zeros((1, Opad), jnp.float32).at[:, :O].set(
        b2.reshape(1, O).astype(jnp.float32))
    return w1p, b1p, w2p, b2p


def _vmem_estimate(tb, F, Hpad, Opad, w_itemsize):
    weights = (F * Hpad + Hpad * Opad) * w_itemsize + (Hpad + Opad) * 4  # single-buffered
    x_buf = 2 * tb * F * 4        # double-buffered streaming input
    out_buf = 2 * tb * Opad * 4   # double-buffered streaming output
    h_tmp = tb * Hpad * 4         # hidden intermediate
    return weights + x_buf + out_buf + h_tmp


@functools.partial(jax.jit, static_argnames=("n_output", "block_b"))
def lrnet_forward(x, w1p, b1p, w2p, b2p, *, n_output, block_b=1024):
    """LRNet forward. x: (B, F); padded params from prepare_params. Returns (B, n_output) f32."""
    B, F = x.shape
    Hpad = w1p.shape[1]
    Opad = w2p.shape[1]
    w_itemsize = jnp.dtype(w1p.dtype).itemsize

    # Batch tile: as big as the VMEM budget allows. A full-batch block (tb == B)
    # is exempt from the sublane-divisibility rule; partial tiles must be
    # multiples of 8.
    if B <= block_b:
        tb = B
    else:
        tb = max(_SUBLANE, (block_b // _SUBLANE) * _SUBLANE)
    budget = 40 * 1024 * 1024  # keep well under v7x's 64 MiB physical VMEM
    while tb > _SUBLANE and _vmem_estimate(tb, F, Hpad, Opad, w_itemsize) > budget:
        tb = max(_SUBLANE, ((tb // 2) // _SUBLANE) * _SUBLANE)

    grid = (pl.cdiv(B, tb),)
    est = _vmem_estimate(tb, F, Hpad, Opad, w_itemsize)
    vmem_limit = int(min(max(2 * est, 32 * 1024 * 1024), 64 * 1024 * 1024))

    out = pl.pallas_call(
        lrnet_kernel,
        out_shape=jax.ShapeDtypeStruct((B, Opad), jnp.float32),
        grid=grid,
        in_specs=[
            # x streams with the batch grid (ragged last block handled by Pallas).
            pl.BlockSpec((tb, F), lambda i: (i, 0)),
            # Resident, constant-index, single-buffered weights/biases.
            pl.BlockSpec((F, Hpad), lambda i: (0, 0), pipeline_mode=pl.Buffered(1)),
            pl.BlockSpec((1, Hpad), lambda i: (0, 0), pipeline_mode=pl.Buffered(1)),
            pl.BlockSpec((Hpad, Opad), lambda i: (0, 0), pipeline_mode=pl.Buffered(1)),
            pl.BlockSpec((1, Opad), lambda i: (0, 0), pipeline_mode=pl.Buffered(1)),
        ],
        out_specs=pl.BlockSpec((tb, Opad), lambda i: (i, 0)),
        compiler_params=pltpu.CompilerParams(
            dimension_semantics=("parallel",),
            vmem_limit_bytes=vmem_limit),
    )(x.astype(jnp.float32), w1p, b1p, w2p, b2p)

    # Slice the logical output columns back out in plain JAX.
    return out[:, :n_output]


def init_params(key, n_feature, n_hidden, n_output):
    """Deterministic init mirroring torch.nn.Linear default (U(+/- 1/sqrt(fan_in)))."""
    k1, k2, k3, k4 = jax.random.split(key, 4)
    lim1 = 1.0 / jnp.sqrt(jnp.float32(n_feature))
    lim2 = 1.0 / jnp.sqrt(jnp.float32(n_hidden))
    # Weights stored as (in, out) = transpose of torch's (out, in).
    w1 = jax.random.uniform(k1, (n_feature, n_hidden), jnp.float32, -lim1, lim1)
    b1 = jax.random.uniform(k2, (1, n_hidden), jnp.float32, -lim1, lim1)
    w2 = jax.random.uniform(k3, (n_hidden, n_output), jnp.float32, -lim2, lim2)
    b2 = jax.random.uniform(k4, (1, n_output), jnp.float32, -lim2, lim2)
    return w1, b1, w2, b2


if __name__ == "__main__":
    n_feature, n_hidden, n_output = 4, 32, 1
    batch = 128
    block_b = 64   # -> 2 batch tiles: streams x/out and feeds both TCs on v7x

    key = jax.random.PRNGKey(0)
    k_x, k_p = jax.random.split(key)
    x = jax.random.normal(k_x, (batch, n_feature), jnp.float32)
    w1, b1, w2, b2 = init_params(k_p, n_feature, n_hidden, n_output)

    # Pure-JAX reference (same math as the PyTorch forward).
    y_ref = jnp.maximum(x @ w1 + b1, 0.0) @ w2 + b2

    # f32 MXU path.
    params_f32 = prepare_params(w1, b1, w2, b2, compute_dtype=jnp.float32)
    y = lrnet_forward(x, *params_f32, n_output=n_output, block_b=block_b)
    jax.block_until_ready(y)
    assert y.shape == (batch, n_output), y.shape
    assert jnp.allclose(y, y_ref, atol=1e-5, rtol=1e-5), \
        float(jnp.max(jnp.abs(y - y_ref)))

    # bf16 matmul-input path (fast MXU path on v6e/v7x; f32 accumulation kept).
    params_bf16 = prepare_params(w1, b1, w2, b2, compute_dtype=jnp.bfloat16)
    y_bf16 = lrnet_forward(x, *params_bf16, n_output=n_output, block_b=block_b)
    jax.block_until_ready(y_bf16)
    assert y_bf16.shape == (batch, n_output), y_bf16.shape
    assert jnp.allclose(y_bf16, y_ref, atol=5e-2, rtol=5e-2), \
        float(jnp.max(jnp.abs(y_bf16 - y_ref)))

    print("KERNEL_OK")
</pallas_src>

<mosaic_0001>
module attributes {stable_mosaic.version = 11 : i64} {
  func.func @lrnet_kernel(%arg0: i32, %arg1: memref<64x4xf32, #tpu.memory_space<vmem>>, %arg2: memref<4x128xf32, #tpu.memory_space<vmem>>, %arg3: memref<1x128xf32, #tpu.memory_space<vmem>>, %arg4: memref<128x128xf32, #tpu.memory_space<vmem>>, %arg5: memref<1x128xf32, #tpu.memory_space<vmem>>, %arg6: memref<64x128xf32, #tpu.memory_space<vmem>>) attributes {dimension_semantics = [#tpu.dimension_semantics<parallel>], iteration_bounds = array<i64: 2>, scalar_prefetch = 0 : i64, scratch_operands = 0 : i64, tpu.core_type = #tpu.core_type<tc>, window_params = [{transform_indices = @transform_0, window_bounds = array<i64: 64, 4>}, {pipeline_mode = #tpu.pipeline_mode<synchronous>, transform_indices = @transform_1, window_bounds = array<i64: 4, 128>}, {pipeline_mode = #tpu.pipeline_mode<synchronous>, transform_indices = @transform_2, window_bounds = array<i64: 1, 128>}, {pipeline_mode = #tpu.pipeline_mode<synchronous>, transform_indices = @transform_3, window_bounds = array<i64: 128, 128>}, {pipeline_mode = #tpu.pipeline_mode<synchronous>, transform_indices = @transform_4, window_bounds = array<i64: 1, 128>}, {transform_indices = @transform_5, window_bounds = array<i64: 64, 128>}]} {
    %c0 = arith.constant 0 : index
    %c0_0 = arith.constant 0 : index
    %0 = vector.load %arg1[%c0, %c0_0] : memref<64x4xf32, #tpu.memory_space<vmem>>, vector<64x4xf32>
    %c0_1 = arith.constant 0 : index
    %c0_2 = arith.constant 0 : index
    %1 = vector.load %arg2[%c0_1, %c0_2] : memref<4x128xf32, #tpu.memory_space<vmem>>, vector<4x128xf32>
    %cst = arith.constant dense<0.000000e+00> : vector<64x128xf32>
    %2 = tpu.matmul %0, %1, %cst {dimension_numbers = #tpu.dot_dimension_numbers<[1], [0], [0], [1], [0, 0, 1, 1], [], []>} : vector<64x4xf32>, vector<4x128xf32>, vector<64x128xf32> -> vector<64x128xf32>
    %c0_3 = arith.constant 0 : index
    %c0_4 = arith.constant 0 : index
    %3 = vector.load %arg3[%c0_3, %c0_4] : memref<1x128xf32, #tpu.memory_space<vmem>>, vector<1x128xf32>
    %4 = vector.broadcast %3 : vector<1x128xf32> to vector<64x128xf32>
    %5 = arith.addf %2, %4 : vector<64x128xf32>
    %cst_5 = arith.constant 0.000000e+00 : f32
    %6 = vector.broadcast %cst_5 : f32 to vector<64x128xf32>
    %7 = arith.maximumf %5, %6 : vector<64x128xf32>
    %c0_6 = arith.constant 0 : index
    %c0_7 = arith.constant 0 : index
    %8 = vector.load %arg4[%c0_6, %c0_7] : memref<128x128xf32, #tpu.memory_space<vmem>>, vector<128x128xf32>
    %cst_8 = arith.constant dense<0.000000e+00> : vector<64x128xf32>
    %9 = tpu.matmul %7, %8, %cst_8 {dimension_numbers = #tpu.dot_dimension_numbers<[1], [0], [0], [1], [0, 0, 1, 1], [], []>} : vector<64x128xf32>, vector<128x128xf32>, vector<64x128xf32> -> vector<64x128xf32>
    %c0_9 = arith.constant 0 : index
    %c0_10 = arith.constant 0 : index
    %10 = vector.load %arg5[%c0_9, %c0_10] : memref<1x128xf32, #tpu.memory_space<vmem>>, vector<1x128xf32>
    %11 = vector.broadcast %10 : vector<1x128xf32> to vector<64x128xf32>
    %12 = arith.addf %9, %11 : vector<64x128xf32>
    %c0_11 = arith.constant 0 : index
    %c0_12 = arith.constant 0 : index
    %13 = vector.load %arg6[%c0_11, %c0_12] : memref<64x128xf32, #tpu.memory_space<vmem>>, vector<64x128xf32>
    tpu.vector_store %arg6[%c0_11, %c0_12], %12 {strides = array<i32>} : memref<64x128xf32, #tpu.memory_space<vmem>>, vector<64x128xf32>,
    return
  }
  func.func @transform_0(%arg0: i32) -> (i32, i32) {
    %c0_i32 = arith.constant 0 : i32
    %c0_i32_0 = arith.constant 0 : i32
    return %arg0, %c0_i32 : i32, i32
  }
  func.func @transform_1(%arg0: i32) -> (i32, i32) {
    %c0_i32 = arith.constant 0 : i32
    %c0_i32_0 = arith.constant 0 : i32
    %c0_i32_1 = arith.constant 0 : i32
    return %c0_i32, %c0_i32_0 : i32, i32
  }
  func.func @transform_2(%arg0: i32) -> (i32, i32) {
    %c0_i32 = arith.constant 0 : i32
    %c0_i32_0 = arith.constant 0 : i32
    %c0_i32_1 = arith.constant 0 : i32
    return %c0_i32, %c0_i32_0 : i32, i32
  }
  func.func @transform_3(%arg0: i32) -> (i32, i32) {
    %c0_i32 = arith.constant 0 : i32
    %c0_i32_0 = arith.constant 0 : i32
    %c0_i32_1 = arith.constant 0 : i32
    return %c0_i32, %c0_i32_0 : i32, i32
  }
  func.func @transform_4(%arg0: i32) -> (i32, i32) {
    %c0_i32 = arith.constant 0 : i32
    %c0_i32_0 = arith.constant 0 : i32
    %c0_i32_1 = arith.constant 0 : i32
    return %c0_i32, %c0_i32_0 : i32, i32
  }
  func.func @transform_5(%arg0: i32) -> (i32, i32) {
    %c0_i32 = arith.constant 0 : i32
    %c0_i32_0 = arith.constant 0 : i32
    return %arg0, %c0_i32 : i32, i32
  }
}

</mosaic_0001>

<llo_original>
// kernel: lrnet_forward.1
$region0: #{lrnet_forward.1}
  #allocation0 [shape = 'u32[]', space=smem, size = 0x4, offset = 0x4, fixed_abs, tag = 'smem constant byte address 0x4 - core index']
  #allocation1 [shape = 'u32[144,128]{1,0:T(1,128)}', space=vmem, size = 0x12000, scoped, tag = 'internal scratch']
  %s0 = inlined_call_operand.vmem [shape: f32[128,4], index: 0, kind: input, shape index: {}]
  %s1 = inlined_call_operand.vmem [shape: f32[4,128], index: 1, kind: input, shape index: {}]
  %s2 = inlined_call_operand.vmem [shape: f32[1,128], index: 2, kind: input, shape index: {}]
  %s3 = inlined_call_operand.vmem [shape: f32[128,128], index: 3, kind: input, shape index: {}]
  %s4 = inlined_call_operand.vmem [shape: f32[1,128], index: 4, kind: input, shape index: {}]
  %s5 = inlined_call_operand.vmem [shape: f32[128,128], index: 5, kind: output, shape index: {}]
  %s6 = sld [smem:[#allocation0]]
  $region53: #{lrnet_forward.1} parent=0
    _
  %s8 = ssub.s32 1, %s6
  %s9 = scalar_select 0, %s8, %s6
  loop: start=0, step=1, limit=4
  $region2: #{lrnet_forward.1} parent=0 // loop_pre_header
    _
  $region3: #{lrnet_forward.1} parent=0 // loop_header
    %s11 = sphi 0, %s15
    %p12 = scmp.ge.s32.totalorder %s11, 4
    %s21 = sphi 0, %s23
    %s24 = sphi 0, %s21
    %s25 = sphi 0, %s24
    %s41 = sphi 0, %s25
    %s45 = sphi 0, %s45
    %s47 = sphi 0, %s45
    %s48 = sphi 0, %s47
    %s62 = sphi 0, %s48
    %s66 = sphi 0, %s66
    %s68 = sphi 0, %s66
    %s69 = sphi 0, %s68
    %s83 = sphi 0, %s69
    %s87 = sphi 0, %s87
    %s89 = sphi 0, %s87
    %s90 = sphi 0, %s89
    %s104 = sphi 0, %s90
    %s108 = sphi 0, %s108
    %s110 = sphi 0, %s108
    %s111 = sphi 0, %s110
    %s125 = sphi 0, %s111
    %s131 = sphi 0, %s133
    %s134 = sphi 0, %s131
    %s135 = sphi 0, %s134
    %s151 = sphi 0, %s135
  $region4: #{lrnet_forward.1} parent=0 // loop_header_branch
    %14 = sbr.rel (%p12) target = $region8
  $region5: #{lrnet_forward.1} parent=0 // loop_body
    %s16 = ssub.s32 %s11, 1
    %s17 = ssub.s32 %s11, 2
    %s18 = sadd.s32 %s11, 1
    %s19 = ssub.s32 %s11, %s18
    %p20 = scmp.eq.s32.totalorder %s19, 0
    %s22 = sadd.s32 %s21, 1
    %s23 = scalar_select %p20, %s21, %s22
    %p26 = pneg %p20
    %p27 = scmp.eq.s32.totalorder %s11, 1
    %p28 = por %p26, %p27
    %p29 = scmp.ne.s32.totalorder %s21, %s24
    %p30 = scmp.eq.s32.totalorder %s11, 0
    %p31 = por %p29, %p30
    %p32 = scmp.ne.s32.totalorder %s21, %s24
    %p33 = scmp.eq.s32.totalorder %s16, 1
    %p34 = por %p32, %p33
    %p35 = scmp.ne.s32.totalorder %s24, %s25
    %p36 = scmp.eq.s32.totalorder %s16, 0
    %p37 = por %p35, %p36
    %p38 = scmp.ne.s32.totalorder %s24, %s25
    %p39 = scmp.eq.s32.totalorder %s17, 1
    %p40 = por %p38, %p39
    %p42 = scmp.ne.s32.totalorder %s25, %s41
    %p43 = scmp.eq.s32.totalorder %s17, 0
    %p44 = por %p42, %p43
    %s46 = sadd.s32 %s45, 1
    %p49 = scmp.eq.s32.totalorder %s11, 1
    %p50 = scmp.ne.s32.totalorder %s45, %s47
    %p51 = scmp.eq.s32.totalorder %s11, 0
    %p52 = por %p50, %p51
    %p53 = scmp.ne.s32.totalorder %s45, %s47
    %p54 = scmp.eq.s32.totalorder %s16, 1
    %p55 = por %p53, %p54
    %p56 = scmp.ne.s32.totalorder %s47, %s48
    %p57 = scmp.eq.s32.totalorder %s16, 0
    %p58 = por %p56, %p57
    %p59 = scmp.ne.s32.totalorder %s47, %s48
    %p60 = scmp.eq.s32.totalorder %s17, 1
    %p61 = por %p59, %p60
    %p63 = scmp.ne.s32.totalorder %s48, %s62
    %p64 = scmp.eq.s32.totalorder %s17, 0
    %p65 = por %p63, %p64
    %s67 = sadd.s32 %s66, 1
    %p70 = scmp.eq.s32.totalorder %s11, 1
    %p71 = scmp.ne.s32.totalorder %s66, %s68
    %p72 = scmp.eq.s32.totalorder %s11, 0
    %p73 = por %p71, %p72
    %p74 = scmp.ne.s32.totalorder %s66, %s68
    %p75 = scmp.eq.s32.totalorder %s16, 1
    %p76 = por %p74, %p75
    %p77 = scmp.ne.s32.totalorder %s68, %s69
    %p78 = scmp.eq.s32.totalorder %s16, 0
    %p79 = por %p77, %p78
    %p80 = scmp.ne.s32.totalorder %s68, %s69
    %p81 = scmp.eq.s32.totalorder %s17, 1
    %p82 = por %p80, %p81
    %p84 = scmp.ne.s32.totalorder %s69, %s83
    %p85 = scmp.eq.s32.totalorder %s17, 0
    %p86 = por %p84, %p85
    %s88 = sadd.s32 %s87, 1
    %p91 = scmp.eq.s32.totalorder %s11, 1
    %p92 = scmp.ne.s32.totalorder %s87, %s89
    %p93 = scmp.eq.s32.totalorder %s11, 0
    %p94 = por %p92, %p93
    %p95 = scmp.ne.s32.totalorder %s87, %s89
    %p96 = scmp.eq.s32.totalorder %s16, 1
    %p97 = por %p95, %p96
    %p98 = scmp.ne.s32.totalorder %s89, %s90
    %p99 = scmp.eq.s32.totalorder %s16, 0
    %p100 = por %p98, %p99
    %p101 = scmp.ne.s32.totalorder %s89, %s90
    %p102 = scmp.eq.s32.totalorder %s17, 1
    %p103 = por %p101, %p102
    %p105 = scmp.ne.s32.totalorder %s90, %s104
    %p106 = scmp.eq.s32.totalorder %s17, 0
    %p107 = por %p105, %p106
    %s109 = sadd.s32 %s108, 1
    %p112 = scmp.eq.s32.totalorder %s11, 1
    %p113 = scmp.ne.s32.totalorder %s108, %s110
    %p114 = scmp.eq.s32.totalorder %s11, 0
    %p115 = por %p113, %p114
    %p116 = scmp.ne.s32.totalorder %s108, %s110
    %p117 = scmp.eq.s32.totalorder %s16, 1
    %p118 = por %p116, %p117
    %p119 = scmp.ne.s32.totalorder %s110, %s111
    %p120 = scmp.eq.s32.totalorder %s16, 0
    %p121 = por %p119, %p120
    %p122 = scmp.ne.s32.totalorder %s110, %s111
    %p123 = scmp.eq.s32.totalorder %s17, 1
    %p124 = por %p122, %p123
    %p126 = scmp.ne.s32.totalorder %s111, %s125
    %p127 = scmp.eq.s32.totalorder %s17, 0
    %p128 = por %p126, %p127
    %s129 = ssub.s32 %s11, %s18
    %p130 = scmp.eq.s32.totalorder %s129, 0
    %s132 = sadd.s32 %s131, 1
    %s133 = scalar_select %p130, %s131, %s132
    %p136 = pneg %p130
    %p137 = scmp.eq.s32.totalorder %s11, 1
    %p138 = por %p136, %p137
    %p139 = scmp.ne.s32.totalorder %s131, %s134
    %p140 = scmp.eq.s32.totalorder %s11, 0
    %p141 = por %p139, %p140
    %p142 = scmp.ne.s32.totalorder %s131, %s134
    %p143 = scmp.eq.s32.totalorder %s16, 1
    %p144 = por %p142, %p143
    %p145 = scmp.ne.s32.totalorder %s134, %s135
    %p146 = scmp.eq.s32.totalorder %s16, 0
    %p147 = por %p145, %p146
    %p148 = scmp.ne.s32.totalorder %s134, %s135
    %p149 = scmp.eq.s32.totalorder %s17, 1
    %p150 = por %p148, %p149
    %p152 = scmp.ne.s32.totalorder %s135, %s151
    %p153 = scmp.eq.s32.totalorder %s17, 0
    %p154 = por %p152, %p153
    %p155 = scmp.le.s32.totalorder 1, %s11
    %p156 = scmp.lt.s32.totalorder %s11, 3
    %p157 = pnand %p155, %p156
    %p158 = pneg %p157
    // Predicated region
    $region9: #{lrnet_forward.1} parent=5 // pred_check
      _
    $region10: #{lrnet_forward.1} parent=5 // pred_check_branch
      %160 = sbr.rel (%p157) target = $region12
    $region11: #{lrnet_forward.1} parent=5 // pred_region
      %s161 = ssub.s32 %s11, 1
      // Predicated region
      $region13: #{lrnet_forward.1} parent=11 // pred_check
        %p162 = pneg %p58
      $region14: #{lrnet_forward.1} parent=11 // pred_check_branch
        %164 = sbr.rel (%p162) target = $region16
      $region15: #{lrnet_forward.1} parent=11 // pred_region
        _
      $region16: #{lrnet_forward.1} parent=11 // pred_fallthru
        _
      // Predicated region
      $region17: #{lrnet_forward.1} parent=11 // pred_check
        %p165 = pneg %p79
      $region18: #{lrnet_forward.1} parent=11 // pred_check_branch
        %167 = sbr.rel (%p165) target = $region20
      $region19: #{lrnet_forward.1} parent=11 // pred_region
        _
      $region20: #{lrnet_forward.1} parent=11 // pred_fallthru
        _
      // Predicated region
      $region21: #{lrnet_forward.1} parent=11 // pred_check
        %p168 = pneg %p100
      $region22: #{lrnet_forward.1} parent=11 // pred_check_branch
        %170 = sbr.rel (%p168) target = $region24
      $region23: #{lrnet_forward.1} parent=11 // pred_region
        _
      $region24: #{lrnet_forward.1} parent=11 // pred_fallthru
        _
      // Predicated region
      $region25: #{lrnet_forward.1} parent=11 // pred_check
        %p171 = pneg %p121
      $region26: #{lrnet_forward.1} parent=11 // pred_check_branch
        %173 = sbr.rel (%p171) target = $region28
      $region27: #{lrnet_forward.1} parent=11 // pred_region
        _
      $region28: #{lrnet_forward.1} parent=11 // pred_fallthru
        _
    $region12: #{lrnet_forward.1} parent=5 // pred_fallthru
      _
    %p174 = scmp.lt.s32.totalorder %s11, 2
    // Predicated region
    $region29: #{lrnet_forward.1} parent=5 // pred_check
      %p175 = pneg %p174
    $region30: #{lrnet_forward.1} parent=5 // pred_check_branch
      %177 = sbr.rel (%p175) target = $region32
    $region31: #{lrnet_forward.1} parent=5 // pred_region
      // Predicated region
      $region33: #{lrnet_forward.1} parent=31 // pred_check
        %p178 = pneg %p31
      $region34: #{lrnet_forward.1} parent=31 // pred_check_branch
        %180 = sbr.rel (%p178) target = $region36
      $region35: #{lrnet_forward.1} parent=31 // pred_region
        %s181 = smul.u32 8, %s11
        %p182 = scmp.lt.s32.totalorder %s181, 15
        %s183 = scalar_select %p182, %s181, 15
        %s184 = smul.addr %s183, 8
        %s185 = scalar_lea.vmem %s0, %s184
        %s186 = smul.u32 8, %s11
      $region36: #{lrnet_forward.1} parent=31 // pred_fallthru
        _
    $region32: #{lrnet_forward.1} parent=5 // pred_fallthru
      _
    %p187 = scmp.le.s32.totalorder 1, %s11
    %p188 = scmp.lt.s32.totalorder %s11, 3
    %p189 = pnand %p187, %p188
    %p190 = pneg %p189
    // Predicated region
    $region37: #{lrnet_forward.1} parent=5 // pred_check
      _
    $region38: #{lrnet_forward.1} parent=5 // pred_check_branch
      %192 = sbr.rel (%p189) target = $region40
    $region39: #{lrnet_forward.1} parent=5 // pred_region
      %s193 = ssub.s32 %s11, 1
      %s194 = smul.u32 8, %s16
      %p195 = scmp.lt.s32.totalorder %s194, 15
      %s196 = scalar_select %p195, %s194, 15
      %s197 = smul.addr %s196, 8
      %s198 = scalar_lea.vmem %s0, %s197
      %p199 = pneg %p37
      %p200 = pneg %p34
      %p201 = pneg %p58
      %p202 = pneg %p55
      %p203 = pneg %p79
      %p204 = pneg %p76
      %p205 = pneg %p100
      %p206 = pneg %p97
      %p207 = pneg %p121
      %p208 = pneg %p118
      %p209 = pneg %p147
      %p210 = pneg %p144
      %s211 = smul.u32 8, %s16
      %p212 = scmp.lt.s32.totalorder %s211, 15
      %s213 = scalar_select %p212, %s211, 15
      %s214 = smul.addr %s213, 8
      %s215 = scalar_lea.vmem %s5, %s214
      %s216 = smul.u32 8, %s16
      %p217 = scmp.lt.s32.totalorder %s216, 15
      %s218 = scalar_select %p217, %s216, 15
      %s219 = smul.addr %s218, 8
      %s220 = scalar_lea.vmem %s0, %s219
      %s221 = smul.u32 8, %s16
      %s222 = smul.u32 8, %s16
      %p223 = scmp.lt.s32.totalorder %s222, 15
      %s224 = scalar_select %p223, %s222, 15
      %s225 = smul.addr %s224, 8
      %s226 = scalar_lea.vmem %s5, %s225
      %s227 = smul.u32 8, %s16
      %v228 = vld [vmem:[%s220] sm:$0xff]
      %v229 = vld [vmem:[%s220 + $0x8] sm:$0xff]
      %v230 = vld [vmem:[%s220 + $0x10] sm:$0xff]
      %v231 = vld [vmem:[%s220 + $0x18] sm:$0xff]
      %v232 = vld [vmem:[%s220 + $0x20] sm:$0xff]
      %v233 = vld [vmem:[%s220 + $0x28] sm:$0xff]
      %v234 = vld [vmem:[%s220 + $0x30] sm:$0xff]
      %v235 = vld [vmem:[%s220 + $0x38] sm:$0xff]
      %v236 = vld [vmem:[%s1] sm:$0xf]
      %v237 = vld [vmem:[%s2] sm:$0x1]
      %v239 = vlaneseq
      %v240 = vshrl.u32 %v239, 7
      %v241 = vsub.s32 0, %v240
      %v242 = vrot.slane %v237, %v241
      %vm244 = vcmask 31744
      %v246 = vsel %vm244, %v228, 0
      %v249 = vsel %vm244, %v229, 0
      %v252 = vsel %vm244, %v230, 0
      %v255 = vsel %vm244, %v231, 0
      %v258 = vsel %vm244, %v232, 0
      %v261 = vsel %vm244, %v233, 0
      %v264 = vsel %vm244, %v234, 0
      %v267 = vsel %vm244, %v235, 0
      %vm269 = vcmask 1043456
      %v271 = vsel %vm269, %v236, 0
      %273 = vmatprep.subr.mxu0 0.0
      %274 = vmatpush1.msra.mxu0 0.0
      %275 = vmatprep.subr.mxu0 0.0
      %276 = vmatpush1.msra.mxu0 0.0
      %277 = vmatprep.subr.mxu0 0.0
      %278 = vmatpush1.msra.mxu0 0.0
      %279 = vmatprep.subr.mxu0 0.0
      %280 = vmatpush1.msra.mxu0 0.0
      %281 = vmatprep.subr.mxu0 0.0
      %282 = vmatpush1.msra.mxu0 0.0
      %283 = vmatprep.subr.mxu0 0.0
      %284 = vmatpush1.msra.mxu0 0.0
      %285 = vmatprep.subr.mxu0 0.0
      %286 = vmatpush1.msra.mxu0 0.0
      %287 = vmatprep.subr.mxu0 0.0
      %288 = vmatpush1.msra.mxu0 0.0
      %289 = vmatprep.subr.mxu0 0.0
      %290 = vmatpush1.msra.mxu0 0.0
      %291 = vmatprep.subr.mxu0 0.0
      %292 = vmatpush1.msra.mxu0 0.0
      %293 = vmatprep.subr.mxu0 0.0
      %294 = vmatpush1.msra.mxu0 0.0
      %295 = vmatprep.subr.mxu0 0.0
      %296 = vmatpush1.msra.mxu0 0.0
      %297 = vmatprep.subr.mxu0 0.0
      %298 = vmatpush1.msra.mxu0 0.0
      %299 = vmatprep.subr.mxu0 0.0
      %300 = vmatpush1.msra.mxu0 0.0
      %301 = vmatprep.subr.mxu0 0.0
      %302 = vmatpush1.msra.mxu0 0.0
      %303 = vmatprep.subr.mxu0 0.0
      %304 = vmatpush1.msra.mxu0 %v271
      %305 = vmatprep.subr.mxu0 0.0
      %306 = vmatpush2.msra.mxu0 0.0
      %307 = vmatprep.subr.mxu0 0.0
      %308 = vmatpush2.msra.mxu0 0.0
      %309 = vmatprep.subr.mxu0 0.0
      %310 = vmatpush2.msra.mxu0 0.0
      %311 = vmatprep.subr.mxu0 0.0
      %312 = vmatpush2.msra.mxu0 0.0
      %313 = vmatprep.subr.mxu0 0.0
      %314 = vmatpush2.msra.mxu0 0.0
      %315 = vmatprep.subr.mxu0 0.0
      %316 = vmatpush2.msra.mxu0 0.0
      %317 = vmatprep.subr.mxu0 0.0
      %318 = vmatpush2.msra.mxu0 0.0
      %319 = vmatprep.subr.mxu0 0.0
      %320 = vmatpush2.msra.mxu0 0.0
      %321 = vmatprep.subr.mxu0 0.0
      %322 = vmatpush2.msra.mxu0 0.0
      %323 = vmatprep.subr.mxu0 0.0
      %324 = vmatpush2.msra.mxu0 0.0
      %325 = vmatprep.subr.mxu0 0.0
      %326 = vmatpush2.msra.mxu0 0.0
      %327 = vmatprep.subr.mxu0 0.0
      %328 = vmatpush2.msra.mxu0 0.0
      %329 = vmatprep.subr.mxu0 0.0
      %330 = vmatpush2.msra.mxu0 0.0
      %331 = vmatprep.subr.mxu0 0.0
      %332 = vmatpush2.msra.mxu0 0.0
      %333 = vmatprep.subr.mxu0 0.0
      %334 = vmatpush2.msra.mxu0 0.0
      %335 = vmatprep.subr.mxu0 0.0
      %336 = vmatpush2.msra.mxu0 0.0
      %337 = vmatprep.mubr.f32.mxu0 0.0
      %338 = vmatmul.mubr.f32.gmra.mxu0 %v246
      %v339 = vpop.f32.mrf.mxu0
      %v340 = vadd.f32 %v242, %v339
      %v341 = vpop.f32.mrf.mxu0
      %342 = vmatprep.mubr.f32.mxu0 0.0
      %343 = vmatmul.mubr.f32.gmra.mxu0 %v249
      %v344 = vpop.f32.mrf.mxu0
      %v345 = vadd.f32 %v242, %v344
      %v346 = vpop.f32.mrf.mxu0
      %347 = vmatprep.mubr.f32.mxu0 0.0
      %348 = vmatmul.mubr.f32.gmra.mxu0 %v252
      %v349 = vpop.f32.mrf.mxu0
      %v350 = vadd.f32 %v242, %v349
      %v351 = vpop.f32.mrf.mxu0
      %352 = vmatprep.mubr.f32.mxu0 0.0
      %353 = vmatmul.mubr.f32.gmra.mxu0 %v255
      %v354 = vpop.f32.mrf.mxu0
      %v355 = vadd.f32 %v242, %v354
      %v356 = vpop.f32.mrf.mxu0
      %357 = vmatprep.mubr.f32.mxu0 0.0
      %358 = vmatmul.mubr.f32.gmra.mxu0 %v258
      %v359 = vpop.f32.mrf.mxu0
      %v360 = vadd.f32 %v242, %v359
      %v361 = vpop.f32.mrf.mxu0
      %362 = vmatprep.mubr.f32.mxu0 0.0
      %363 = vmatmul.mubr.f32.gmra.mxu0 %v261
      %v364 = vpop.f32.mrf.mxu0
      %v365 = vadd.f32 %v242, %v364
      %v366 = vpop.f32.mrf.mxu0
      %367 = vmatprep.mubr.f32.mxu0 0.0
      %368 = vmatmul.mubr.f32.gmra.mxu0 %v264
      %v369 = vpop.f32.mrf.mxu0
      %v370 = vadd.f32 %v242, %v369
      %v371 = vpop.f32.mrf.mxu0
      %372 = vmatprep.mubr.f32.mxu0 0.0
      %373 = vmatmul.mubr.f32.gmra.mxu0 %v267
      %v374 = vpop.f32.mrf.mxu0
      %v375 = vadd.f32 %v242, %v374
      %v376 = vpop.f32.mrf.mxu0
      %377 = vdwg.mxu0
      %v378 = vmax.f32 %v340, 0.0
      %v379 = vmax.f32 %v345, 0.0
      %v380 = vmax.f32 %v350, 0.0
      %v381 = vmax.f32 %v355, 0.0
      %v382 = vmax.f32 %v360, 0.0
      %v383 = vmax.f32 %v365, 0.0
      %v384 = vmax.f32 %v370, 0.0
      %v385 = vmax.f32 %v375, 0.0
      %v386 = vld [vmem:[%s3] sm:$0xff]
      %v387 = vld [vmem:[%s3 + $0x8] sm:$0xff]
      %v388 = vld [vmem:[%s3 + $0x10] sm:$0xff]
      %v389 = vld [vmem:[%s3 + $0x18] sm:$0xff]
      %v390 = vld [vmem:[%s3 + $0x20] sm:$0xff]
      %v391 = vld [vmem:[%s3 + $0x28] sm:$0xff]
      %v392 = vld [vmem:[%s3 + $0x30] sm:$0xff]
      %v393 = vld [vmem:[%s3 + $0x38] sm:$0xff]
      %v394 = vld [vmem:[%s3 + $0x40] sm:$0xff]
      %v395 = vld [vmem:[%s3 + $0x48] sm:$0xff]
      %v396 = vld [vmem:[%s3 + $0x50] sm:$0xff]
      %v397 = vld [vmem:[%s3 + $0x58] sm:$0xff]
      %v398 = vld [vmem:[%s3 + $0x60] sm:$0xff]
      %v399 = vld [vmem:[%s3 + $0x68] sm:$0xff]
      %v400 = vld [vmem:[%s3 + $0x70] sm:$0xff]
      %v401 = vld [vmem:[%s3 + $0x78] sm:$0xff]
      %v402 = vld [vmem:[%s4] sm:$0x1]
      %v404 = vlaneseq
      %v405 = vshrl.u32 %v404, 7
      %v406 = vsub.s32 0, %v405
      %v407 = vrot.slane %v402, %v406
      %409 = vmatprep.subr.mxu0 0.0
      %410 = vmatpush1.msra.mxu0 %v401
      %411 = vmatprep.subr.mxu0 0.0
      %412 = vmatpush1.msra.mxu0 %v400
      %413 = vmatprep.subr.mxu0 0.0
      %414 = vmatpush1.msra.mxu0 %v399
      %415 = vmatprep.subr.mxu0 0.0
      %416 = vmatpush1.msra.mxu0 %v398
      %417 = vmatprep.subr.mxu0 0.0
      %418 = vmatpush1.msra.mxu0 %v397
      %419 = vmatprep.subr.mxu0 0.0
      %420 = vmatpush1.msra.mxu0 %v396
      %421 = vmatprep.subr.mxu0 0.0
      %422 = vmatpush1.msra.mxu0 %v395
      %423 = vmatprep.subr.mxu0 0.0
      %424 = vmatpush1.msra.mxu0 %v394
      %425 = vmatprep.subr.mxu0 0.0
      %426 = vmatpush1.msra.mxu0 %v393
      %427 = vmatprep.subr.mxu0 0.0
      %428 = vmatpush1.msra.mxu0 %v392
      %429 = vmatprep.subr.mxu0 0.0
      %430 = vmatpush1.msra.mxu0 %v391
      %431 = vmatprep.subr.mxu0 0.0
      %432 = vmatpush1.msra.mxu0 %v390
      %433 = vmatprep.subr.mxu0 0.0
      %434 = vmatpush1.msra.mxu0 %v389
      %435 = vmatprep.subr.mxu0 0.0
      %436 = vmatpush1.msra.mxu0 %v388
      %437 = vmatprep.subr.mxu0 0.0
      %438 = vmatpush1.msra.mxu0 %v387
      %439 = vmatprep.subr.mxu0 0.0
      %440 = vmatpush1.msra.mxu0 %v386
      %441 = vmatprep.subr.mxu0 0.0
      %442 = vmatpush2.msra.mxu0 0.0
      %443 = vmatprep.subr.mxu0 0.0
      %444 = vmatpush2.msra.mxu0 0.0
      %445 = vmatprep.subr.mxu0 0.0
      %446 = vmatpush2.msra.mxu0 0.0
      %447 = vmatprep.subr.mxu0 0.0
      %448 = vmatpush2.msra.mxu0 0.0
      %449 = vmatprep.subr.mxu0 0.0
      %450 = vmatpush2.msra.mxu0 0.0
      %451 = vmatprep.subr.mxu0 0.0
      %452 = vmatpush2.msra.mxu0 0.0
      %453 = vmatprep.subr.mxu0 0.0
      %454 = vmatpush2.msra.mxu0 0.0
      %455 = vmatprep.subr.mxu0 0.0
      %456 = vmatpush2.msra.mxu0 0.0
      %457 = vmatprep.subr.mxu0 0.0
      %458 = vmatpush2.msra.mxu0 0.0
      %459 = vmatprep.subr.mxu0 0.0
      %460 = vmatpush2.msra.mxu0 0.0
      %461 = vmatprep.subr.mxu0 0.0
      %462 = vmatpush2.msra.mxu0 0.0
      %463 = vmatprep.subr.mxu0 0.0
      %464 = vmatpush2.msra.mxu0 0.0
      %465 = vmatprep.subr.mxu0 0.0
      %466 = vmatpush2.msra.mxu0 0.0
      %467 = vmatprep.subr.mxu0 0.0
      %468 = vmatpush2.msra.mxu0 0.0
      %469 = vmatprep.subr.mxu0 0.0
      %470 = vmatpush2.msra.mxu0 0.0
      %471 = vmatprep.subr.mxu0 0.0
      %472 = vmatpush2.msra.mxu0 0.0
      %473 = vmatprep.mubr.f32.mxu0 0.0
      %474 = vmatmul.mubr.f32.gmra.mxu0 %v378
      %v475 = vpop.f32.mrf.mxu0
      %v476 = vadd.f32 %v407, %v475
      %v477 = vpop.f32.mrf.mxu0
      %478 = vmatprep.mubr.f32.mxu0 0.0
      %479 = vmatmul.mubr.f32.gmra.mxu0 %v379
      %v480 = vpop.f32.mrf.mxu0
      %v481 = vadd.f32 %v407, %v480
      %v482 = vpop.f32.mrf.mxu0
      %483 = vmatprep.mubr.f32.mxu0 0.0
      %484 = vmatmul.mubr.f32.gmra.mxu0 %v380
      %v485 = vpop.f32.mrf.mxu0
      %v486 = vadd.f32 %v407, %v485
      %v487 = vpop.f32.mrf.mxu0
      %488 = vmatprep.mubr.f32.mxu0 0.0
      %489 = vmatmul.mubr.f32.gmra.mxu0 %v381
      %v490 = vpop.f32.mrf.mxu0
      %v491 = vadd.f32 %v407, %v490
      %v492 = vpop.f32.mrf.mxu0
      %493 = vmatprep.mubr.f32.mxu0 0.0
      %494 = vmatmul.mubr.f32.gmra.mxu0 %v382
      %v495 = vpop.f32.mrf.mxu0
      %v496 = vadd.f32 %v407, %v495
      %v497 = vpop.f32.mrf.mxu0
      %498 = vmatprep.mubr.f32.mxu0 0.0
      %499 = vmatmul.mubr.f32.gmra.mxu0 %v383
      %v500 = vpop.f32.mrf.mxu0
      %v501 = vadd.f32 %v407, %v500
      %v502 = vpop.f32.mrf.mxu0
      %503 = vmatprep.mubr.f32.mxu0 0.0
      %504 = vmatmul.mubr.f32.gmra.mxu0 %v384
      %v505 = vpop.f32.mrf.mxu0
      %v506 = vadd.f32 %v407, %v505
      %v507 = vpop.f32.mrf.mxu0
      %508 = vmatprep.mubr.f32.mxu0 0.0
      %509 = vmatmul.mubr.f32.gmra.mxu0 %v385
      %v510 = vpop.f32.mrf.mxu0
      %v511 = vadd.f32 %v407, %v510
      %v512 = vpop.f32.mrf.mxu0
      %513 = vdwg.mxu0
      %514 = vst [vmem:[%s226] sm:$0xff] %v476
      %515 = vst [vmem:[%s226 + $0x8] sm:$0xff] %v481
      %516 = vst [vmem:[%s226 + $0x10] sm:$0xff] %v486
      %517 = vst [vmem:[%s226 + $0x18] sm:$0xff] %v491
      %518 = vst [vmem:[%s226 + $0x20] sm:$0xff] %v496
      %519 = vst [vmem:[%s226 + $0x28] sm:$0xff] %v501
      %520 = vst [vmem:[%s226 + $0x30] sm:$0xff] %v506
      %521 = vst [vmem:[%s226 + $0x38] sm:$0xff] %v511
      %s522 = smul.u32 8, %s16
      %p523 = scmp.lt.s32.totalorder %s522, 15
      %s524 = scalar_select %p523, %s522, 15
      %s525 = smul.addr %s524, 8
      %s526 = scalar_lea.vmem %s5, %s525
      // Predicated region
      $region41: #{lrnet_forward.1} parent=39 // pred_check
        %p527 = pneg %p144
      $region42: #{lrnet_forward.1} parent=39 // pred_check_branch
        %529 = sbr.rel (%p527) target = $region44
      $region43: #{lrnet_forward.1} parent=39 // pred_region
        %s530 = smul.u32 8, %s16
      $region44: #{lrnet_forward.1} parent=39 // pred_fallthru
        _
    $region40: #{lrnet_forward.1} parent=5 // pred_fallthru
      _
    %p531 = scmp.le.s32.totalorder 2, %s11
    // Predicated region
    $region45: #{lrnet_forward.1} parent=5 // pred_check
      %p532 = pneg %p531
    $region46: #{lrnet_forward.1} parent=5 // pred_check_branch
      %534 = sbr.rel (%p532) target = $region48
    $region47: #{lrnet_forward.1} parent=5 // pred_region
      %s535 = ssub.s32 %s11, 2
      // Predicated region
      $region49: #{lrnet_forward.1} parent=47 // pred_check
        %p536 = pneg %p150
      $region50: #{lrnet_forward.1} parent=47 // pred_check_branch
        %538 = sbr.rel (%p536) target = $region52
      $region51: #{lrnet_forward.1} parent=47 // pred_region
        %s539 = smul.u32 8, %s17
        %p540 = scmp.lt.s32.totalorder %s539, 15
        %s541 = scalar_select %p540, %s539, 15
        %s542 = smul.addr %s541, 8
        %s543 = scalar_lea.vmem %s5, %s542
      $region52: #{lrnet_forward.1} parent=47 // pred_fallthru
        _
    $region48: #{lrnet_forward.1} parent=5 // pred_fallthru
      _
  $region6: #{lrnet_forward.1} parent=0 // loop_footer
    %s15 = sadd.s32 1, %s11
  $region7: #{lrnet_forward.1} parent=0 // loop_footer_branch
    %10 = sbr.rel target = $region3
  $region8: #{lrnet_forward.1} parent=0 // loop_exit
    _

</llo_original>
